<compile_context>
chip_gen: v6e
topology: v6e:2x2x1
jax: 0.10.0
libtpu: 0.0.40
codegen_flags: <defaults>
</compile_context>

<pallas_src>
import jax
import jax.numpy as jnp
from jax.experimental import pallas as pl
from jax.experimental.pallas import tpu as pltpu


def ae_kernel(x_ref, w1_ref, b1_ref, w24_ref, b24_ref, out_ref):
    # One batch tile: (TB, 12) -> relu(fc1) -> relu(fused fc2*fc4).
    x = x_ref[...]
    h = jnp.dot(x, w1_ref[...], preferred_element_type=jnp.float32) + b1_ref[...]
    h = jnp.maximum(h, 0.0)                               # relu(fc1(x))
    y = jnp.dot(h, w24_ref[...], preferred_element_type=jnp.float32) + b24_ref[...]
    y = jnp.maximum(y, 0.0)                               # relu(fc4(fc2(h)))
    out_ref[...] = y.astype(out_ref.dtype)


def _choose_batch_tile(B, target=1024):
    """Large multiple-of-8 batch tile; covers tiny batches with one block."""
    if B <= target:
        return max(8, ((B + 7) // 8) * 8)
    return target


def ae_forward(x, params):
    """x: [B, 12] float32 -> recon_x: [B, 12] float32."""
    w1, b1, w2, b2, w4, b4 = params
    B, F_in = x.shape
    F_out = w4.shape[1]

    # Pre-fuse the activation-free fc2 . fc4 pair (done once, outside the kernel).
    w24 = w2 @ w4                    # [8, 12]
    b24 = b2 @ w4 + b4               # [1, 12]

    TB = _choose_batch_tile(B)
    grid = (pl.cdiv(B, TB),)

    in_specs = [
        pl.BlockSpec((TB, F_in), lambda i: (i, 0)),        # x: tiled over batch
        pl.BlockSpec(w1.shape, lambda i: (0, 0)),          # weights/biases resident
        pl.BlockSpec(b1.shape, lambda i: (0, 0)),
        pl.BlockSpec(w24.shape, lambda i: (0, 0)),
        pl.BlockSpec(b24.shape, lambda i: (0, 0)),
    ]
    out_specs = pl.BlockSpec((TB, F_out), lambda i: (i, 0))

    # Memory-bound kernel: give XLA an honest cost hint.
    cost = pl.CostEstimate(
        flops=2 * B * (F_in * 8 + 8 * F_out),
        transcendentals=0,
        bytes_accessed=4 * B * (F_in + F_out)
        + 4 * (w1.size + b1.size + w24.size + b24.size),
    )

    return pl.pallas_call(
        ae_kernel,
        out_shape=jax.ShapeDtypeStruct((B, F_out), jnp.float32),
        grid=grid,
        in_specs=in_specs,
        out_specs=out_specs,
        compiler_params=pltpu.CompilerParams(
            dimension_semantics=("parallel",),
        ),
        cost_estimate=cost,
    )(x, w1, b1, w24, b24)


def init_params(key, latent_size=8):
    """Deterministic init mimicking PyTorch nn.Linear default (uniform +-1/sqrt(fan_in))."""
    def linear(k, fan_in, fan_out):
        kw, kb = jax.random.split(k)
        bound = 1.0 / jnp.sqrt(fan_in)
        # stored as [in, out] (transposed relative to PyTorch's [out, in])
        w = jax.random.uniform(kw, (fan_in, fan_out), jnp.float32, -bound, bound)
        b = jax.random.uniform(kb, (1, fan_out), jnp.float32, -bound, bound)
        return w, b

    k1, k2, k3, k4 = jax.random.split(key, 4)
    w1, b1 = linear(k1, 12, 8)             # encoder.fc1
    w2, b2 = linear(k2, 8, latent_size)    # encoder.fc2
    _w3, _b3 = linear(k3, latent_size, 8)  # decoder.fc3 (unused in forward)
    w4, b4 = linear(k4, 8, 12)             # decoder.fc4
    return (w1, b1, w2, b2, w4, b4)


def ae_reference(x, params):
    """Plain-JAX reference (unfused) for correctness check."""
    w1, b1, w2, b2, w4, b4 = params
    h = jnp.maximum(x @ w1 + b1, 0.0)
    z = h @ w2 + b2
    return jnp.maximum(z @ w4 + b4, 0.0)


if __name__ == "__main__":
    key = jax.random.PRNGKey(0)
    kx, kp = jax.random.split(key)

    latent_size = 8          # required: decoder.fc4 expects 8 input features
    batch = 8
    x = jax.random.normal(kx, (batch, 12), jnp.float32)
    params = init_params(kp, latent_size)

    out = ae_forward(x, params)
    out = jax.block_until_ready(out)

    ref = ae_reference(x, params)
    assert out.shape == (batch, 12)
    assert jnp.allclose(out, ref, atol=1e-5, rtol=1e-5)

    # Also exercise the tiled/pipelined path with a batch that needs a partial
    # final tile and multiple grid steps.
    big_b = 2500
    xb = jax.random.normal(jax.random.PRNGKey(1), (big_b, 12), jnp.float32)
    out_big = jax.block_until_ready(ae_forward(xb, params))
    ref_big = ae_reference(xb, params)
    assert out_big.shape == (big_b, 12)
    assert jnp.allclose(out_big, ref_big, atol=1e-5, rtol=1e-5)

    print("KERNEL_OK")
</pallas_src>

<mosaic_0001>
module attributes {stable_mosaic.version = 11 : i64} {
  func.func @ae_kernel(%arg0: i32, %arg1: memref<8x12xf32, #tpu.memory_space<vmem>>, %arg2: memref<12x8xf32, #tpu.memory_space<vmem>>, %arg3: memref<1x8xf32, #tpu.memory_space<vmem>>, %arg4: memref<8x12xf32, #tpu.memory_space<vmem>>, %arg5: memref<1x12xf32, #tpu.memory_space<vmem>>, %arg6: memref<8x12xf32, #tpu.memory_space<vmem>>) attributes {dimension_semantics = [#tpu.dimension_semantics<parallel>], iteration_bounds = array<i64: 1>, scalar_prefetch = 0 : i64, scratch_operands = 0 : i64, tpu.core_type = #tpu.core_type<tc>, window_params = [{transform_indices = @transform_0, window_bounds = array<i64: 8, 12>}, {pipeline_mode = #tpu.pipeline_mode<synchronous>, transform_indices = @transform_1, window_bounds = array<i64: 12, 8>}, {pipeline_mode = #tpu.pipeline_mode<synchronous>, transform_indices = @transform_2, window_bounds = array<i64: 1, 8>}, {pipeline_mode = #tpu.pipeline_mode<synchronous>, transform_indices = @transform_3, window_bounds = array<i64: 8, 12>}, {pipeline_mode = #tpu.pipeline_mode<synchronous>, transform_indices = @transform_4, window_bounds = array<i64: 1, 12>}, {transform_indices = @transform_5, window_bounds = array<i64: 8, 12>}]} {
    %c0 = arith.constant 0 : index
    %c0_0 = arith.constant 0 : index
    %0 = vector.load %arg1[%c0, %c0_0] : memref<8x12xf32, #tpu.memory_space<vmem>>, vector<8x12xf32>
    %c0_1 = arith.constant 0 : index
    %c0_2 = arith.constant 0 : index
    %1 = vector.load %arg2[%c0_1, %c0_2] : memref<12x8xf32, #tpu.memory_space<vmem>>, vector<12x8xf32>
    %cst = arith.constant dense<0.000000e+00> : vector<8x8xf32>
    %2 = tpu.matmul %0, %1, %cst {dimension_numbers = #tpu.dot_dimension_numbers<[1], [0], [0], [1], [0, 0, 1, 1], [], []>} : vector<8x12xf32>, vector<12x8xf32>, vector<8x8xf32> -> vector<8x8xf32>
    %c0_3 = arith.constant 0 : index
    %c0_4 = arith.constant 0 : index
    %3 = vector.load %arg3[%c0_3, %c0_4] : memref<1x8xf32, #tpu.memory_space<vmem>>, vector<1x8xf32>
    %4 = vector.broadcast %3 : vector<1x8xf32> to vector<8x8xf32>
    %5 = arith.addf %2, %4 : vector<8x8xf32>
    %cst_5 = arith.constant 0.000000e+00 : f32
    %6 = vector.broadcast %cst_5 : f32 to vector<8x8xf32>
    %7 = arith.maximumf %5, %6 : vector<8x8xf32>
    %c0_6 = arith.constant 0 : index
    %c0_7 = arith.constant 0 : index
    %8 = vector.load %arg4[%c0_6, %c0_7] : memref<8x12xf32, #tpu.memory_space<vmem>>, vector<8x12xf32>
    %cst_8 = arith.constant dense<0.000000e+00> : vector<8x12xf32>
    %9 = tpu.matmul %7, %8, %cst_8 {dimension_numbers = #tpu.dot_dimension_numbers<[1], [0], [0], [1], [0, 0, 1, 1], [], []>} : vector<8x8xf32>, vector<8x12xf32>, vector<8x12xf32> -> vector<8x12xf32>
    %c0_9 = arith.constant 0 : index
    %c0_10 = arith.constant 0 : index
    %10 = vector.load %arg5[%c0_9, %c0_10] : memref<1x12xf32, #tpu.memory_space<vmem>>, vector<1x12xf32>
    %11 = vector.broadcast %10 : vector<1x12xf32> to vector<8x12xf32>
    %12 = arith.addf %9, %11 : vector<8x12xf32>
    %cst_11 = arith.constant 0.000000e+00 : f32
    %13 = vector.broadcast %cst_11 : f32 to vector<8x12xf32>
    %14 = arith.maximumf %12, %13 : vector<8x12xf32>
    %c0_12 = arith.constant 0 : index
    %c0_13 = arith.constant 0 : index
    %15 = vector.load %arg6[%c0_12, %c0_13] : memref<8x12xf32, #tpu.memory_space<vmem>>, vector<8x12xf32>
    tpu.vector_store %arg6[%c0_12, %c0_13], %14 {strides = array<i32>} : memref<8x12xf32, #tpu.memory_space<vmem>>, vector<8x12xf32>,
    return
  }
  func.func @transform_0(%arg0: i32) -> (i32, i32) {
    %c0_i32 = arith.constant 0 : i32
    %c0_i32_0 = arith.constant 0 : i32
    return %arg0, %c0_i32 : i32, i32
  }
  func.func @transform_1(%arg0: i32) -> (i32, i32) {
    %c0_i32 = arith.constant 0 : i32
    %c0_i32_0 = arith.constant 0 : i32
    %c0_i32_1 = arith.constant 0 : i32
    return %c0_i32, %c0_i32_0 : i32, i32
  }
  func.func @transform_2(%arg0: i32) -> (i32, i32) {
    %c0_i32 = arith.constant 0 : i32
    %c0_i32_0 = arith.constant 0 : i32
    %c0_i32_1 = arith.constant 0 : i32
    return %c0_i32, %c0_i32_0 : i32, i32
  }
  func.func @transform_3(%arg0: i32) -> (i32, i32) {
    %c0_i32 = arith.constant 0 : i32
    %c0_i32_0 = arith.constant 0 : i32
    %c0_i32_1 = arith.constant 0 : i32
    return %c0_i32, %c0_i32_0 : i32, i32
  }
  func.func @transform_4(%arg0: i32) -> (i32, i32) {
    %c0_i32 = arith.constant 0 : i32
    %c0_i32_0 = arith.constant 0 : i32
    %c0_i32_1 = arith.constant 0 : i32
    return %c0_i32, %c0_i32_0 : i32, i32
  }
  func.func @transform_5(%arg0: i32) -> (i32, i32) {
    %c0_i32 = arith.constant 0 : i32
    %c0_i32_0 = arith.constant 0 : i32
    return %arg0, %c0_i32 : i32, i32
  }
}

</mosaic_0001>

<llo_original>
// kernel: tpu_custom_call.1
$region0: #{tpu_custom_call.1}
  #allocation0 [shape = 'u32[]', space=smem, size = 0x4, offset = 0x4, fixed_abs, tag = 'smem constant byte address 0x4 - core index']
  #allocation1 [shape = 'u32[144,128]{1,0:T(1,128)}', space=vmem, size = 0x12000, scoped, tag = 'internal scratch']
  %s0 = inlined_call_operand.vmem [shape: f32[8,12], index: 0, kind: input, shape index: {}]
  %s1 = inlined_call_operand.vmem [shape: f32[12,8], index: 1, kind: input, shape index: {}]
  %s2 = inlined_call_operand.vmem [shape: f32[1,8], index: 2, kind: input, shape index: {}]
  %s3 = inlined_call_operand.vmem [shape: f32[8,12], index: 3, kind: input, shape index: {}]
  %s4 = inlined_call_operand.vmem [shape: f32[1,12], index: 4, kind: input, shape index: {}]
  %s5 = inlined_call_operand.hbm [shape: f32[8,12], index: 5, kind: output, shape index: {}]
  %s6 = sld [smem:[#allocation0]]
  $region30: #{tpu_custom_call.1} parent=0
    _
  %s8 = ssub.s32 1, %s6
  %s9 = scalar_select 0, %s8, %s6
  $region1: #{tpu_custom_call.1} parent=0
    #allocation2 [shape = 'u8[4096]{0}', space=vmem, size = 0x1000, scoped, tag = 'output window, operand 0, single buffered']
    #allocation3 [shape = 's32[1]{0}', space=sflag, size = 0x4, scoped, tag = 'scoped memory for tpu_custom_call.1']
    %10 = vsyncpa [#allocation3], 0
    // Predicated region
    $region2: #{tpu_custom_call.1} parent=1 // pred_check
      _
    $region3: #{tpu_custom_call.1} parent=1 // pred_check_branch
      %12 = sbr.rel (0) target = $region5
    $region4: #{tpu_custom_call.1} parent=1 // pred_region
      _
    $region5: #{tpu_custom_call.1} parent=1 // pred_fallthru
      _
    // Predicated region
    $region6: #{tpu_custom_call.1} parent=1 // pred_check
      _
    $region7: #{tpu_custom_call.1} parent=1 // pred_check_branch
      %14 = sbr.rel (0) target = $region9
    $region8: #{tpu_custom_call.1} parent=1 // pred_region
      _
    $region9: #{tpu_custom_call.1} parent=1 // pred_fallthru
      _
    // Predicated region
    $region10: #{tpu_custom_call.1} parent=1 // pred_check
      _
    $region11: #{tpu_custom_call.1} parent=1 // pred_check_branch
      %16 = sbr.rel (0) target = $region13
    $region12: #{tpu_custom_call.1} parent=1 // pred_region
      _
    $region13: #{tpu_custom_call.1} parent=1 // pred_fallthru
      _
    // Predicated region
    $region14: #{tpu_custom_call.1} parent=1 // pred_check
      _
    $region15: #{tpu_custom_call.1} parent=1 // pred_check_branch
      %18 = sbr.rel (0) target = $region17
    $region16: #{tpu_custom_call.1} parent=1 // pred_region
      _
    $region17: #{tpu_custom_call.1} parent=1 // pred_fallthru
      _
    // Predicated region
    $region18: #{tpu_custom_call.1} parent=1 // pred_check
      _
    $region19: #{tpu_custom_call.1} parent=1 // pred_check_branch
      %20 = sbr.rel (0) target = $region21
    $region20: #{tpu_custom_call.1} parent=1 // pred_region
      _
    $region21: #{tpu_custom_call.1} parent=1 // pred_fallthru
      _
    %v21 = vld [vmem:[%s0] sm:$0xff]
    %v22 = vld [vmem:[%s1] sm:$0xff]
    %v23 = vld [vmem:[%s1 + $0x8] sm:$0xf]
    %v24 = vld [vmem:[%s2] sm:$0x1]
    %v26 = vlaneseq
    %v27 = vshrl.u32 %v26, 7
    %v28 = vsub.s32 0, %v27
    %v29 = vrot.slane %v24, %v28
    %vm31 = vcmask 97280
    %v33 = vsel %vm31, %v21, 0
    %vm35 = vcmask 1043456
    %v37 = vsel %vm35, %v23, 0
    %39 = vmatprep.subr.mxu0 0.0
    %40 = vmatpush1.msra.mxu0 0.0
    %41 = vmatprep.subr.mxu0 0.0
    %42 = vmatpush1.msra.mxu0 0.0
    %43 = vmatprep.subr.mxu0 0.0
    %44 = vmatpush1.msra.mxu0 0.0
    %45 = vmatprep.subr.mxu0 0.0
    %46 = vmatpush1.msra.mxu0 0.0
    %47 = vmatprep.subr.mxu0 0.0
    %48 = vmatpush1.msra.mxu0 0.0
    %49 = vmatprep.subr.mxu0 0.0
    %50 = vmatpush1.msra.mxu0 0.0
    %51 = vmatprep.subr.mxu0 0.0
    %52 = vmatpush1.msra.mxu0 0.0
    %53 = vmatprep.subr.mxu0 0.0
    %54 = vmatpush1.msra.mxu0 0.0
    %55 = vmatprep.subr.mxu0 0.0
    %56 = vmatpush1.msra.mxu0 0.0
    %57 = vmatprep.subr.mxu0 0.0
    %58 = vmatpush1.msra.mxu0 0.0
    %59 = vmatprep.subr.mxu0 0.0
    %60 = vmatpush1.msra.mxu0 0.0
    %61 = vmatprep.subr.mxu0 0.0
    %62 = vmatpush1.msra.mxu0 0.0
    %63 = vmatprep.subr.mxu0 0.0
    %64 = vmatpush1.msra.mxu0 0.0
    %65 = vmatprep.subr.mxu0 0.0
    %66 = vmatpush1.msra.mxu0 0.0
    %67 = vmatprep.subr.mxu0 0.0
    %68 = vmatpush1.msra.mxu0 %v37
    %69 = vmatprep.subr.mxu0 0.0
    %70 = vmatpush1.msra.mxu0 %v22
    %71 = vmatprep.subr.mxu0 0.0
    %72 = vmatpush2.msra.mxu0 0.0
    %73 = vmatprep.subr.mxu0 0.0
    %74 = vmatpush2.msra.mxu0 0.0
    %75 = vmatprep.subr.mxu0 0.0
    %76 = vmatpush2.msra.mxu0 0.0
    %77 = vmatprep.subr.mxu0 0.0
    %78 = vmatpush2.msra.mxu0 0.0
    %79 = vmatprep.subr.mxu0 0.0
    %80 = vmatpush2.msra.mxu0 0.0
    %81 = vmatprep.subr.mxu0 0.0
    %82 = vmatpush2.msra.mxu0 0.0
    %83 = vmatprep.subr.mxu0 0.0
    %84 = vmatpush2.msra.mxu0 0.0
    %85 = vmatprep.subr.mxu0 0.0
    %86 = vmatpush2.msra.mxu0 0.0
    %87 = vmatprep.subr.mxu0 0.0
    %88 = vmatpush2.msra.mxu0 0.0
    %89 = vmatprep.subr.mxu0 0.0
    %90 = vmatpush2.msra.mxu0 0.0
    %91 = vmatprep.subr.mxu0 0.0
    %92 = vmatpush2.msra.mxu0 0.0
    %93 = vmatprep.subr.mxu0 0.0
    %94 = vmatpush2.msra.mxu0 0.0
    %95 = vmatprep.subr.mxu0 0.0
    %96 = vmatpush2.msra.mxu0 0.0
    %97 = vmatprep.subr.mxu0 0.0
    %98 = vmatpush2.msra.mxu0 0.0
    %99 = vmatprep.subr.mxu0 0.0
    %100 = vmatpush2.msra.mxu0 0.0
    %101 = vmatprep.subr.mxu0 0.0
    %102 = vmatpush2.msra.mxu0 0.0
    %103 = vmatprep.mubr.f32.mxu0 0.0
    %104 = vmatmul.mubr.f32.gmra.mxu0 %v33
    %v105 = vpop.f32.mrf.mxu0
    %v106 = vadd.f32 %v29, %v105
    %v107 = vpop.f32.mrf.mxu0
    %108 = vdwg.mxu0
    %v109 = vmax.f32 %v106, 0.0
    %v110 = vld [vmem:[%s3] sm:$0xff]
    %v111 = vld [vmem:[%s4] sm:$0x1]
    %v113 = vlaneseq
    %v114 = vshrl.u32 %v113, 7
    %v115 = vsub.s32 0, %v114
    %v116 = vrot.slane %v111, %v115
    %vm118 = vcmask 64512
    %v120 = vsel %vm118, %v109, 0
    %122 = vmatprep.subr.mxu0 0.0
    %123 = vmatpush1.msra.mxu0 0.0
    %124 = vmatprep.subr.mxu0 0.0
    %125 = vmatpush1.msra.mxu0 0.0
    %126 = vmatprep.subr.mxu0 0.0
    %127 = vmatpush1.msra.mxu0 0.0
    %128 = vmatprep.subr.mxu0 0.0
    %129 = vmatpush1.msra.mxu0 0.0
    %130 = vmatprep.subr.mxu0 0.0
    %131 = vmatpush1.msra.mxu0 0.0
    %132 = vmatprep.subr.mxu0 0.0
    %133 = vmatpush1.msra.mxu0 0.0
    %134 = vmatprep.subr.mxu0 0.0
    %135 = vmatpush1.msra.mxu0 0.0
    %136 = vmatprep.subr.mxu0 0.0
    %137 = vmatpush1.msra.mxu0 0.0
    %138 = vmatprep.subr.mxu0 0.0
    %139 = vmatpush1.msra.mxu0 0.0
    %140 = vmatprep.subr.mxu0 0.0
    %141 = vmatpush1.msra.mxu0 0.0
    %142 = vmatprep.subr.mxu0 0.0
    %143 = vmatpush1.msra.mxu0 0.0
    %144 = vmatprep.subr.mxu0 0.0
    %145 = vmatpush1.msra.mxu0 0.0
    %146 = vmatprep.subr.mxu0 0.0
    %147 = vmatpush1.msra.mxu0 0.0
    %148 = vmatprep.subr.mxu0 0.0
    %149 = vmatpush1.msra.mxu0 0.0
    %150 = vmatprep.subr.mxu0 0.0
    %151 = vmatpush1.msra.mxu0 0.0
    %152 = vmatprep.subr.mxu0 0.0
    %153 = vmatpush1.msra.mxu0 %v110
    %154 = vmatprep.subr.mxu0 0.0
    %155 = vmatpush2.msra.mxu0 0.0
    %156 = vmatprep.subr.mxu0 0.0
    %157 = vmatpush2.msra.mxu0 0.0
    %158 = vmatprep.subr.mxu0 0.0
    %159 = vmatpush2.msra.mxu0 0.0
    %160 = vmatprep.subr.mxu0 0.0
    %161 = vmatpush2.msra.mxu0 0.0
    %162 = vmatprep.subr.mxu0 0.0
    %163 = vmatpush2.msra.mxu0 0.0
    %164 = vmatprep.subr.mxu0 0.0
    %165 = vmatpush2.msra.mxu0 0.0
    %166 = vmatprep.subr.mxu0 0.0
    %167 = vmatpush2.msra.mxu0 0.0
    %168 = vmatprep.subr.mxu0 0.0
    %169 = vmatpush2.msra.mxu0 0.0
    %170 = vmatprep.subr.mxu0 0.0
    %171 = vmatpush2.msra.mxu0 0.0
    %172 = vmatprep.subr.mxu0 0.0
    %173 = vmatpush2.msra.mxu0 0.0
    %174 = vmatprep.subr.mxu0 0.0
    %175 = vmatpush2.msra.mxu0 0.0
    %176 = vmatprep.subr.mxu0 0.0
    %177 = vmatpush2.msra.mxu0 0.0
    %178 = vmatprep.subr.mxu0 0.0
    %179 = vmatpush2.msra.mxu0 0.0
    %180 = vmatprep.subr.mxu0 0.0
    %181 = vmatpush2.msra.mxu0 0.0
    %182 = vmatprep.subr.mxu0 0.0
    %183 = vmatpush2.msra.mxu0 0.0
    %184 = vmatprep.subr.mxu0 0.0
    %185 = vmatpush2.msra.mxu0 0.0
    %186 = vmatprep.mubr.f32.mxu0 0.0
    %187 = vmatmul.mubr.f32.gmra.mxu0 %v120
    %v188 = vpop.f32.mrf.mxu0
    %v189 = vadd.f32 %v116, %v188
    %v190 = vpop.f32.mrf.mxu0
    %191 = vdwg.mxu0
    %v192 = vmax.f32 %v189, 0.0
    %193 = vst.msk [vmem:[#allocation2] sm:$0xff] %vm31, %v192
    // Predicated region
    $region22: #{tpu_custom_call.1} parent=1 // pred_check
      _
    $region23: #{tpu_custom_call.1} parent=1 // pred_check_branch
      %195 = sbr.rel (0) target = $region25
    $region24: #{tpu_custom_call.1} parent=1 // pred_region
      %s197 = ssub.s32 128, 128
      %198 = vsyncadd [#allocation3], %s197
      %s200 = sshll.u32 [#allocation2], 4
      %s201 = int_to_ptr.vmem [resolvable:$true] %s200
      %203 = dma.vmem_to_hbm [thread:$0]  %s201, 128, %s5, [#allocation3]
    $region25: #{tpu_custom_call.1} parent=1 // pred_fallthru
      _
    // Predicated region
    $region26: #{tpu_custom_call.1} parent=1 // pred_check
      _
    $region27: #{tpu_custom_call.1} parent=1 // pred_check_branch
      %205 = sbr.rel (0) target = $region29
    $region28: #{tpu_custom_call.1} parent=1 // pred_region
      %206 = dma.done [#allocation3], 128
    $region29: #{tpu_custom_call.1} parent=1 // pred_fallthru
      _
    %207 = vsyncpa [#allocation3], 1

</llo_original>
